<compile_context>
chip_gen: v7x
topology: tpu7x:2x2x1
jax: 0.10.0
libtpu: 0.0.40
codegen_flags: <defaults>
</compile_context>

<pallas_src>
import jax
import jax.numpy as jnp
import numpy as np
from jax.experimental import pallas as pl
from jax.experimental.pallas import tpu as pltpu


_BLOCK_TARGET_BYTES = 2 << 20   # aim for ~2 MiB blocks (DMA sweet spot)
_SLAB_BUDGET_BYTES = 4 << 20    # max trailing-slab block for the leading-swap path
_VMEM_CAP_BYTES = 64 << 20      # never request more than v7x physical VMEM


def _trailing_swap_kernel(x_ref, o_ref):
    # x_ref: (Bt, TS, TD) -> o_ref: (Bt, TD, TS); XLU transpose per tile.
    o_ref[...] = jnp.swapaxes(x_ref[...], -1, -2)


def _copy_kernel(x_ref, o_ref):
    # Leading-dim swap: permutation is done by the index_map; body is a copy.
    o_ref[...] = x_ref[...]


def _pick_tile(dim):
    """Tile size for an axis that appears both as a lane dim (needs x128) and a
    sublane dim (needs x8) across the input/output blocks.  Tile only when the
    axis is a multiple of 128; otherwise take the full axis."""
    if dim <= 0 or dim % 128 != 0:
        return dim
    for t in (512, 256, 128):
        if t <= dim and dim % t == 0:
            return t
    return dim


def _largest_divisor_leq(n, cap):
    cap = max(1, min(n, int(cap)))
    for d in range(cap, 0, -1):
        if n % d == 0:
            return d
    return 1


def _vmem_limit(block_bytes):
    # in + out blocks, double-buffered each, plus headroom.
    return int(min(_VMEM_CAP_BYTES, 4 * block_bytes + (8 << 20)))


def transpose_pallas(x, dim0, dim1):
    """Pallas equivalent of torch.Tensor.transpose(dim0, dim1) (contiguous result)."""
    ndim = x.ndim
    a, b = sorted((dim0 % ndim, dim1 % ndim))
    if a == b:
        return x  # no-op

    out_shape = list(x.shape)
    out_shape[a], out_shape[b] = out_shape[b], out_shape[a]
    out_shape = tuple(out_shape)

    itemsize = jnp.dtype(x.dtype).itemsize
    cost = pl.CostEstimate(flops=0, transcendentals=0,
                           bytes_accessed=2 * x.size * itemsize)

    # ---- Case 1: swap of the two trailing dims -> tiled XLU transpose ----
    if (a, b) == (ndim - 2, ndim - 1):
        S, D = x.shape[-2], x.shape[-1]
        lead = x.shape[:ndim - 2]
        L = int(np.prod(lead)) if lead else 1

        # Flatten leading dims (free, contiguous reshape) so we can batch them.
        x3 = x.reshape((L, S, D))

        TS = _pick_tile(S)
        TD = _pick_tile(D)
        tile_bytes = max(TS * TD * itemsize, 1)
        bt_cap = max(1, _BLOCK_TARGET_BYTES // tile_bytes)
        Bt = _largest_divisor_leq(L, bt_cap)
        block_bytes = Bt * tile_bytes

        grid = (L // Bt, S // TS, D // TD)

        out3 = pl.pallas_call(
            _trailing_swap_kernel,
            out_shape=jax.ShapeDtypeStruct((L, D, S), x.dtype),
            grid=grid,
            in_specs=[pl.BlockSpec((Bt, TS, TD), lambda l, i, j: (l, i, j))],
            out_specs=pl.BlockSpec((Bt, TD, TS), lambda l, i, j: (l, j, i)),
            compiler_params=pltpu.CompilerParams(
                dimension_semantics=("parallel",) * 3,
                vmem_limit_bytes=_vmem_limit(block_bytes)),
            cost_estimate=cost,
        )(x3)
        return out3.reshape(lead + (D, S))

    # ---- Case 2: swap of two leading dims -> pure DMA-addressed permutation ----
    if b < ndim - 2:
        trail = x.shape[b + 1:]          # identically mapped dims (>= 2 of them)
        n_trail = len(trail)
        D_last = trail[-1]
        slab_bytes = int(np.prod(trail)) * itemsize

        # Fold the whole trailing slab into the block; tile only the last dim
        # if the slab would exceed the VMEM budget.
        td = D_last
        if slab_bytes > _SLAB_BUDGET_BYTES and D_last % 128 == 0:
            per_unit = max(1, slab_bytes // D_last)   # bytes per unit of last dim
            max_td = max(128, (_SLAB_BUDGET_BYTES // per_unit) // 128 * 128)
            td = 128
            for t in range(int(max_td), 127, -128):
                if D_last % t == 0:
                    td = t
                    break

        block = (1,) * (b + 1) + tuple(trail[:-1]) + (td,)
        block_bytes = int(np.prod(block)) * itemsize
        grid = tuple(out_shape[:b + 1]) + (D_last // td,)

        def out_idx_map(*idx):
            return (*idx[:b + 1], *((0,) * (n_trail - 1)), idx[b + 1])

        def in_idx_map(*idx):
            lead_idx = list(idx[:b + 1])
            lead_idx[a], lead_idx[b] = lead_idx[b], lead_idx[a]
            return (*lead_idx, *((0,) * (n_trail - 1)), idx[b + 1])

        return pl.pallas_call(
            _copy_kernel,
            out_shape=jax.ShapeDtypeStruct(out_shape, x.dtype),
            grid=grid,
            in_specs=[pl.BlockSpec(block, in_idx_map)],
            out_specs=pl.BlockSpec(block, out_idx_map),
            compiler_params=pltpu.CompilerParams(
                dimension_semantics=("parallel",) * len(grid),
                vmem_limit_bytes=_vmem_limit(block_bytes)),
            cost_estimate=cost,
        )(x)

    # ---- Case 3: swap of a leading dim with one of the two trailing dims ----
    # TODO(synk): a minor<->major dim swap has no single-pass rectangular tiling
    # on TPU (needs multi-pass vxpose + DMA permutes); PatchTST only ever uses
    # Transpose(1,2)/(2,1) on [B, q_len, d_model], so this path is not needed.
    raise NotImplementedError(
        f"transpose_pallas: swap of dims ({dim0},{dim1}) on rank-{ndim} input "
        "is not supported")


class Transpose:
    """Mirror of PatchTST_backbone.Transpose, backed by a Pallas TPU kernel."""

    def __init__(self, *dims, contiguous=False):
        self.dims, self.contiguous = dims, contiguous

    def __call__(self, x):
        # Pallas always writes a fresh contiguous buffer, so `contiguous` is a
        # no-op here (matches x.transpose(*dims).contiguous() semantics).
        return transpose_pallas(x, *self.dims)


if __name__ == "__main__":
    key = jax.random.PRNGKey(0)
    k1, k2, k3, k4 = jax.random.split(key, 4)

    # PatchTST usage: Transpose(1, 2) on [B, q_len, d_model] (around BatchNorm1d).
    x3 = jax.random.normal(k1, (2, 16, 32), jnp.float32)
    y3 = jax.block_until_ready(Transpose(1, 2)(x3))
    assert y3.shape == (2, 32, 16)
    np.testing.assert_array_equal(np.asarray(y3), np.asarray(jnp.swapaxes(x3, 1, 2)))

    # Transpose(2, 1, contiguous=True): same swap; contiguous is inherent under Pallas.
    y3b = jax.block_until_ready(Transpose(2, 1, contiguous=True)(x3))
    np.testing.assert_array_equal(np.asarray(y3b), np.asarray(jnp.swapaxes(x3, 2, 1)))

    # Larger, 128-divisible trailing swap: exercises the tiled + batched path.
    xb = jax.random.normal(k2, (2, 256, 512), jnp.float32)
    yb = jax.block_until_ready(Transpose(1, 2)(xb))
    assert yb.shape == (2, 512, 256)
    np.testing.assert_array_equal(np.asarray(yb), np.asarray(jnp.swapaxes(xb, 1, 2)))

    # Leading-dim swap on a 4-D tensor (DMA-addressed permutation, folded trailing slab).
    x4 = jax.random.normal(k3, (2, 4, 8, 16), jnp.float32)
    y4 = jax.block_until_ready(Transpose(0, 1)(x4))
    assert y4.shape == (4, 2, 8, 16)
    np.testing.assert_array_equal(np.asarray(y4), np.asarray(jnp.swapaxes(x4, 0, 1)))

    # 2-D trailing transpose (handled by the same tiled 3-D path, L=1).
    x2 = jax.random.normal(k4, (8, 128), jnp.float32)
    y2 = jax.block_until_ready(Transpose(0, 1)(x2))
    np.testing.assert_array_equal(np.asarray(y2), np.asarray(x2.T))

    print("KERNEL_OK")
</pallas_src>

<mosaic_0001>
module attributes {stable_mosaic.version = 11 : i64} {
  func.func @_trailing_swap_kernel(%arg0: i32, %arg1: i32, %arg2: i32, %arg3: memref<2x16x32xf32, #tpu.memory_space<vmem>>, %arg4: memref<2x32x16xf32, #tpu.memory_space<vmem>>) attributes {dimension_semantics = [#tpu.dimension_semantics<parallel>, #tpu.dimension_semantics<parallel>, #tpu.dimension_semantics<parallel>], iteration_bounds = array<i64: 1, 1, 1>, scalar_prefetch = 0 : i64, scratch_operands = 0 : i64, tpu.core_type = #tpu.core_type<tc>, window_params = [{transform_indices = @transform_0, window_bounds = array<i64: 2, 16, 32>}, {transform_indices = @transform_1, window_bounds = array<i64: 2, 32, 16>}]} {
    %c0 = arith.constant 0 : index
    %c0_0 = arith.constant 0 : index
    %c0_1 = arith.constant 0 : index
    %0 = vector.load %arg3[%c0, %c0_0, %c0_1] : memref<2x16x32xf32, #tpu.memory_space<vmem>>, vector<2x16x32xf32>
    %1 = tpu.transpose %0, [0, 2, 1] : vector<2x16x32xf32> -> vector<2x32x16xf32>
    %c0_2 = arith.constant 0 : index
    %c0_3 = arith.constant 0 : index
    %c0_4 = arith.constant 0 : index
    %2 = vector.load %arg4[%c0_2, %c0_3, %c0_4] : memref<2x32x16xf32, #tpu.memory_space<vmem>>, vector<2x32x16xf32>
    tpu.vector_store %arg4[%c0_2, %c0_3, %c0_4], %1 {strides = array<i32>} : memref<2x32x16xf32, #tpu.memory_space<vmem>>, vector<2x32x16xf32>,
    return
  }
  func.func @transform_0(%arg0: i32, %arg1: i32, %arg2: i32) -> (i32, i32, i32) {
    %c0_i32 = arith.constant 0 : i32
    return %arg0, %arg1, %arg2 : i32, i32, i32
  }
  func.func @transform_1(%arg0: i32, %arg1: i32, %arg2: i32) -> (i32, i32, i32) {
    %c0_i32 = arith.constant 0 : i32
    return %arg0, %arg2, %arg1 : i32, i32, i32
  }
}

</mosaic_0001>

<llo_original>
// kernel: tpu_custom_call.1
$region0: #{tpu_custom_call.1}
  #allocation0 [shape = 'u32[]', space=smem, size = 0x4, offset = 0x4, fixed_abs, tag = 'smem constant byte address 0x4 - core index']
  #allocation1 [shape = 'u32[144,128]{1,0:T(1,128)}', space=vmem, size = 0x12000, scoped, tag = 'internal scratch']
  %s0 = inlined_call_operand.hbm [shape: f32[2,16,32], index: 0, kind: input, shape index: {}]
  %s1 = inlined_call_operand.vmem [shape: f32[2,32,16], index: 1, kind: output, shape index: {}]
  %s2 = sld [smem:[#allocation0]]
  $region18: #{tpu_custom_call.1} parent=0
    _
  %s4 = ssub.s32 1, %s2
  %s5 = scalar_select 0, %s4, %s2
  $region1: #{tpu_custom_call.1} parent=0
    #allocation2 [shape = 'u8[16384]{0}', space=vmem, size = 0x4000, scoped, tag = 'input window, operand 0, single buffered']
    #allocation3 [shape = 's32[1]{0}', space=sflag, size = 0x4, scoped, tag = 'scoped memory for tpu_custom_call.1']
    %6 = vsyncpa [#allocation3], 0
    // Predicated region
    $region2: #{tpu_custom_call.1} parent=1 // pred_check
      _
    $region3: #{tpu_custom_call.1} parent=1 // pred_check_branch
      %8 = sbr.rel (0) target = $region5
    $region4: #{tpu_custom_call.1} parent=1 // pred_region
      %s10 = ssub.s32 512, 512
      %11 = vsyncadd [#allocation3], %s10
      %s12 = sshll.u32 [#allocation2], 4
      %s13 = int_to_ptr.vmem [resolvable:$true] %s12
      %18 = dma.hbm_to_vmem [thread:$0]  %s0, 512, %s13, [#allocation3], 128, 128, 8
    $region5: #{tpu_custom_call.1} parent=1 // pred_fallthru
      _
    // Predicated region
    $region6: #{tpu_custom_call.1} parent=1 // pred_check
      _
    $region7: #{tpu_custom_call.1} parent=1 // pred_check_branch
      %20 = sbr.rel (0) target = $region9
    $region8: #{tpu_custom_call.1} parent=1 // pred_region
      %21 = dma.done [#allocation3], 512
    $region9: #{tpu_custom_call.1} parent=1 // pred_fallthru
      _
    %v22 = vld [vmem:[#allocation2] sm:$0xff]
    %v23 = vld [vmem:[#allocation2 + $0x8] sm:$0xff]
    %v24 = vld [vmem:[#allocation2 + $0x10] sm:$0xff]
    %v25 = vld [vmem:[#allocation2 + $0x18] sm:$0xff]
    %26 = vxpose.xlu0.b32.start [1/16] %v22, 128
    %27 = vxpose.xlu0.b32.cont [2/16] %v23, 128
    %28 = vxpose.xlu0.b32.cont [3/16] 0.0, 128
    %29 = vxpose.xlu0.b32.cont [4/16] 0.0, 128
    %30 = vxpose.xlu0.b32.cont [5/16] 0.0, 128
    %31 = vxpose.xlu0.b32.cont [6/16] 0.0, 128
    %32 = vxpose.xlu0.b32.cont [7/16] 0.0, 128
    %33 = vxpose.xlu0.b32.cont [8/16] 0.0, 128
    %34 = vxpose.xlu0.b32.cont [9/16] 0.0, 128
    %35 = vxpose.xlu0.b32.cont [10/16] 0.0, 128
    %36 = vxpose.xlu0.b32.cont [11/16] 0.0, 128
    %37 = vxpose.xlu0.b32.cont [12/16] 0.0, 128
    %38 = vxpose.xlu0.b32.cont [13/16] 0.0, 128
    %39 = vxpose.xlu0.b32.cont [14/16] 0.0, 128
    %40 = vxpose.xlu0.b32.cont [15/16] 0.0, 128
    %41 = vxpose.xlu0.b32.end [16/16] 0.0, 128
    %v42 = vpop.trf.xlu0
    %v43 = vpop.trf.xlu0
    %v44 = vpop.trf.xlu0
    %v45 = vpop.trf.xlu0
    %v46 = vpop.trf.xlu0
    %v47 = vpop.trf.xlu0
    %v48 = vpop.trf.xlu0
    %v49 = vpop.trf.xlu0
    %v50 = vpop.trf.xlu0
    %v51 = vpop.trf.xlu0
    %v52 = vpop.trf.xlu0
    %v53 = vpop.trf.xlu0
    %v54 = vpop.trf.xlu0
    %v55 = vpop.trf.xlu0
    %v56 = vpop.trf.xlu0
    %v57 = vpop.trf.xlu0
    %58 = vxpose.xlu0.b32.start [1/16] %v24, 128
    %59 = vxpose.xlu0.b32.cont [2/16] %v25, 128
    %60 = vxpose.xlu0.b32.cont [3/16] 0.0, 128
    %61 = vxpose.xlu0.b32.cont [4/16] 0.0, 128
    %62 = vxpose.xlu0.b32.cont [5/16] 0.0, 128
    %63 = vxpose.xlu0.b32.cont [6/16] 0.0, 128
    %64 = vxpose.xlu0.b32.cont [7/16] 0.0, 128
    %65 = vxpose.xlu0.b32.cont [8/16] 0.0, 128
    %66 = vxpose.xlu0.b32.cont [9/16] 0.0, 128
    %67 = vxpose.xlu0.b32.cont [10/16] 0.0, 128
    %68 = vxpose.xlu0.b32.cont [11/16] 0.0, 128
    %69 = vxpose.xlu0.b32.cont [12/16] 0.0, 128
    %70 = vxpose.xlu0.b32.cont [13/16] 0.0, 128
    %71 = vxpose.xlu0.b32.cont [14/16] 0.0, 128
    %72 = vxpose.xlu0.b32.cont [15/16] 0.0, 128
    %73 = vxpose.xlu0.b32.end [16/16] 0.0, 128
    %v74 = vpop.trf.xlu0
    %v75 = vpop.trf.xlu0
    %v76 = vpop.trf.xlu0
    %v77 = vpop.trf.xlu0
    %v78 = vpop.trf.xlu0
    %v79 = vpop.trf.xlu0
    %v80 = vpop.trf.xlu0
    %v81 = vpop.trf.xlu0
    %v82 = vpop.trf.xlu0
    %v83 = vpop.trf.xlu0
    %v84 = vpop.trf.xlu0
    %v85 = vpop.trf.xlu0
    %v86 = vpop.trf.xlu0
    %v87 = vpop.trf.xlu0
    %v88 = vpop.trf.xlu0
    %v89 = vpop.trf.xlu0
    %vm90 = vcmask 130048
    %91 = vst.msk [vmem:[%s1] sm:$0xff] %vm90, %v42
    %92 = vst.msk [vmem:[%s1 + $0x8] sm:$0xff] %vm90, %v43
    %93 = vst.msk [vmem:[%s1 + $0x10] sm:$0xff] %vm90, %v44
    %94 = vst.msk [vmem:[%s1 + $0x18] sm:$0xff] %vm90, %v45
    %95 = vst.msk [vmem:[%s1 + $0x20] sm:$0xff] %vm90, %v74
    %96 = vst.msk [vmem:[%s1 + $0x28] sm:$0xff] %vm90, %v75
    %97 = vst.msk [vmem:[%s1 + $0x30] sm:$0xff] %vm90, %v76
    %98 = vst.msk [vmem:[%s1 + $0x38] sm:$0xff] %vm90, %v77
    // Predicated region
    $region10: #{tpu_custom_call.1} parent=1 // pred_check
      _
    $region11: #{tpu_custom_call.1} parent=1 // pred_check_branch
      %100 = sbr.rel (0) target = $region13
    $region12: #{tpu_custom_call.1} parent=1 // pred_region
      _
    $region13: #{tpu_custom_call.1} parent=1 // pred_fallthru
      _
    // Predicated region
    $region14: #{tpu_custom_call.1} parent=1 // pred_check
      _
    $region15: #{tpu_custom_call.1} parent=1 // pred_check_branch
      %102 = sbr.rel (0) target = $region17
    $region16: #{tpu_custom_call.1} parent=1 // pred_region
      _
    $region17: #{tpu_custom_call.1} parent=1 // pred_fallthru
      _
    %103 = vsyncpa [#allocation3], 1

</llo_original>
